<compile_context>
chip_gen: v7x
topology: tpu7x:2x2x1
jax: 0.10.0
libtpu: 0.0.40
codegen_flags: <defaults>
</compile_context>

<pallas_src>
import math

import jax
import jax.numpy as jnp
from jax.experimental import pallas as pl
from jax.experimental.pallas import tpu as pltpu


# ----------------------------------------------------------------------------- kernel


def _sfg_fc_kernel(task_ref, f_ref, x_ref, o_ref):
    # task_ref: (1,) int32 in SMEM (already consumed by f's index_map).
    # f_ref:    (1, 1, C) per-task scale row (VMEM-resident across the grid).
    # x_ref/o_ref: (TM, C) activation tiles.  One VPU multiply per element.
    del task_ref
    o_ref[...] = x_ref[...] * f_ref[0]


# ----------------------------------------------------------------------------- layout planning


def _sublane(dtype) -> int:
    """Sublane packing per dtype: 8 rows (4B), 16 rows (2B), 32 rows (1B)."""
    return max(8, 32 // max(1, jnp.dtype(dtype).itemsize))


def _plan_layout(B, C, target_lanes=1024):
    """Pick a lane-dense layout so the packed last dim is a multiple of 128.

    Returns (k, b_pad, c_pad):
      x padded to (B + b_pad, C + c_pad) and reshaped to
      ((B + b_pad) // k, k * (C + c_pad)); the scale row is tiled k times.
    Guarantees full-width vst (no masked vst.msk partial stores).
    """
    k_min = 128 // math.gcd(C, 128)
    if k_min == 1:
        return 1, 0, 0                      # C already a multiple of 128

    # Row-packing plan: fold k rows into lanes; grow k toward wider lane rows
    # while the batch allows (fewer sublane-partial edges, better vst util).
    k = k_min
    while 2 * k * C <= target_lanes and 2 * k <= max(B, 1):
        k *= 2
    b_pad = (-B) % k
    row_waste = b_pad * C

    # Column-padding plan: pad C up to the next multiple of 128 once.
    c_pad = (-C) % 128
    col_waste = B * c_pad

    if row_waste <= col_waste:
        return k, b_pad, 0
    return 1, 0, c_pad


def _pick_rows_per_tile(rows, cols, itemsize, sub=8, tile_bytes=8 * 1024 * 1024):
    """Rows per block so one buffer is ~tile_bytes (x2 dbl-buffer, x2 in/out)."""
    tm = tile_bytes // max(1, cols * itemsize)
    tm = max(sub, (tm // sub) * sub)        # dtype-aware sublane alignment
    return int(rows) if tm >= rows else int(tm)


def _pack_scales(f_all, k, c_pad, dtype):
    """(task_num, c_out) -> (task_num, 1, cols) packed/padded scale table."""
    f = f_all.astype(dtype)
    if c_pad:
        f = jnp.pad(f, ((0, 0), (0, c_pad)))
    if k > 1:
        f = jnp.tile(f, (1, k))             # tiny (task_num, k*C) array
    return f.reshape(f.shape[0], 1, f.shape[1])


# ----------------------------------------------------------------------------- forward


def sfg_fc_forward(x, f_all, task, *, scale_cache=None,
                   min_pallas_bytes=1 << 20, tile_bytes=8 * 1024 * 1024):
    """Pallas SFG_FC.forward: out = x * f_all[task][None, :].

    x:      (B, c_out) activations.
    f_all:  (task_num, c_out) stacked per-task scale parameters (init: ones).
    task:   python int or int32 scalar -- resolved at runtime inside the kernel
            via scalar prefetch (no static-int requirement).
    scale_cache: optional dict; packed scale tables are cached in it and
            reused across calls (hoists jnp.tile/astype out of the hot path).
    min_pallas_bytes: shapes smaller than this use plain XLA -- a standalone
            kernel launch dominates the multiply at LeNet sizes.
    """
    B, C = x.shape
    itemsize = jnp.dtype(x.dtype).itemsize

    # Small-shape fast path: one XLA fused multiply beats a kernel launch.
    if B * C * itemsize < min_pallas_bytes:
        return x * f_all[task].astype(x.dtype)[None, :]

    # ---- lane-dense layout: fold rows into lanes or pad C to 128 (never
    # fall back to a sub-128 lane / masked-store layout).
    k, b_pad, c_pad = _plan_layout(B, C)
    xp = x
    if c_pad:
        xp = jnp.pad(xp, ((0, 0), (0, c_pad)))
    if b_pad:
        xp = jnp.pad(xp, ((0, b_pad), (0, 0)))
    rows = (B + b_pad) // k
    cols = (C + c_pad) * k
    x2 = xp.reshape(rows, cols)

    if scale_cache is not None:
        ckey = (k, c_pad, jnp.dtype(x.dtype).name)
        f2 = scale_cache.get(ckey)
        if f2 is None:
            f2 = _pack_scales(f_all, k, c_pad, x.dtype)
            scale_cache[ckey] = f2
    else:
        f2 = _pack_scales(f_all, k, c_pad, x.dtype)

    # ---- tiling: big blocks to amortize per-step overhead; explicit VMEM
    # budget sized for 2x(in)+2x(out) buffers + the scale row, capped for v7x.
    tm = _pick_rows_per_tile(rows, cols, itemsize,
                             sub=_sublane(x.dtype), tile_bytes=tile_bytes)
    grid = (pl.cdiv(rows, tm),)
    block_bytes = tm * cols * itemsize
    vmem_limit = int(min(48 << 20,
                         max(16 << 20,
                             4 * block_bytes + cols * itemsize + (4 << 20))))

    task_idx = jnp.asarray(task, dtype=jnp.int32).reshape((1,))

    out = pl.pallas_call(
        _sfg_fc_kernel,
        out_shape=jax.ShapeDtypeStruct((rows, cols), x.dtype),
        grid_spec=pltpu.PrefetchScalarGridSpec(
            num_scalar_prefetch=1,
            grid=grid,
            in_specs=[
                # Per-task scale: data-dependent index_map on the prefetched
                # task id; constant block index across the grid -> DMA'd once.
                pl.BlockSpec((1, 1, cols),
                             lambda i, task_ref: (task_ref[0], 0, 0)),
                # Activations: tiled over rows for software pipelining.
                pl.BlockSpec((tm, cols), lambda i, task_ref: (i, 0)),
            ],
            out_specs=pl.BlockSpec((tm, cols), lambda i, task_ref: (i, 0)),
        ),
        compiler_params=pltpu.CompilerParams(
            dimension_semantics=("parallel",),   # batch tiles shard across TCs
            vmem_limit_bytes=vmem_limit,
        ),
        # Alias x -> out (in-place `x *= F` semantics inside the call).
        # Flat arg index 2 = x2 (0 = task_idx scalar prefetch, 1 = f2);
        # verified against this JAX version (shapes would mismatch loudly
        # otherwise).
        input_output_aliases={2: 0},
    )(task_idx, f2, x2)

    out = out.reshape(B + b_pad, C + c_pad)
    if b_pad or c_pad:
        out = out[:B, :C]
    return out


class SFGFC:
    """JAX port of the PyTorch SFG_FC module (per-task (c_out,) scale)."""

    def __init__(self, c_out: int, task_num: int, dtype=jnp.float32):
        # Matches nn.Parameter(torch.ones(c_out)) per task.
        self.f_all = jnp.ones((task_num, c_out), dtype=dtype)
        self._scale_cache = {}   # hoisted packed scale tables, reused per call

    def __call__(self, x, task, **kw):
        return sfg_fc_forward(x, self.f_all, task,
                              scale_cache=self._scale_cache, **kw)


# ----------------------------------------------------------------------------- demo / checks


if __name__ == "__main__":
    key = jax.random.PRNGKey(0)
    task_num, task = 3, 1
    k1, k2, k3 = jax.random.split(key, 3)

    # Case 1: lane-packable shape (B=8, C=32 -> k grows to 8, cols=256).
    # Small enough that the default dispatch would take the XLA path, so force
    # the Pallas path for the check.
    B1, C1 = 8, 32
    x1 = jax.random.normal(k1, (B1, C1), dtype=jnp.float32)
    f_ones = jnp.ones((task_num, C1), dtype=jnp.float32)   # torch.ones init
    out1 = jax.block_until_ready(sfg_fc_forward(x1, f_ones, task,
                                                min_pallas_bytes=0))
    ref1 = x1 * f_ones[task][None, :]
    assert out1.shape == (B1, C1)
    assert jnp.allclose(out1, ref1, atol=1e-6, rtol=1e-6)

    # Non-trivial scales to verify task selection + lane packing.
    f_rand = jax.random.normal(jax.random.PRNGKey(1), (task_num, C1),
                               dtype=jnp.float32) + 1.0
    out1b = jax.block_until_ready(sfg_fc_forward(x1, f_rand, task,
                                                 min_pallas_bytes=0))
    ref1b = x1 * f_rand[task][None, :]
    assert jnp.allclose(out1b, ref1b, atol=1e-6, rtol=1e-6)

    # Case 2: B not a multiple of k -> zero-row padding path (still lane-dense,
    # no masked stores), output sliced back to (B, C).
    B2, C2 = 2, 32
    x2 = jax.random.normal(k2, (B2, C2), dtype=jnp.float32)
    out2 = jax.block_until_ready(sfg_fc_forward(x2, f_rand, task,
                                                min_pallas_bytes=0))
    ref2 = x2 * f_rand[task][None, :]
    assert out2.shape == (B2, C2)
    assert jnp.allclose(out2, ref2, atol=1e-6, rtol=1e-6)

    # Case 3: C already a multiple of 128, multi-step grid (small tile_bytes
    # override exercises the double-buffered pipeline), cached scales via the
    # module-style wrapper.
    B3, C3 = 1024, 256
    x3 = jax.random.normal(k3, (B3, C3), dtype=jnp.float32)
    mod = SFGFC(C3, task_num)
    mod.f_all = jax.random.normal(jax.random.PRNGKey(2), (task_num, C3),
                                  dtype=jnp.float32) + 1.0
    out3 = jax.block_until_ready(mod(x3, 2, min_pallas_bytes=0,
                                     tile_bytes=128 * 1024))
    ref3 = x3 * mod.f_all[2][None, :]
    assert out3.shape == (B3, C3)
    assert jnp.allclose(out3, ref3, atol=1e-6, rtol=1e-6)
    # Second call reuses the cached packed scale table (hoisted prep).
    out3b = jax.block_until_ready(mod(x3, 0, min_pallas_bytes=0,
                                      tile_bytes=128 * 1024))
    assert jnp.allclose(out3b, x3 * mod.f_all[0][None, :], atol=1e-6, rtol=1e-6)

    # Case 4: bf16 activations exercise the dtype-aware sublane alignment.
    x4 = jax.random.normal(k1, (16, 32), dtype=jnp.bfloat16)
    out4 = jax.block_until_ready(sfg_fc_forward(x4, f_rand, task,
                                                min_pallas_bytes=0))
    ref4 = x4 * f_rand[task].astype(jnp.bfloat16)[None, :]
    assert jnp.allclose(out4.astype(jnp.float32), ref4.astype(jnp.float32),
                        atol=1e-2, rtol=1e-2)

    # Case 5: default dispatch at LeNet size routes to plain XLA (no launch).
    out5 = jax.block_until_ready(sfg_fc_forward(x2, f_rand, task))
    assert jnp.allclose(out5, ref2, atol=1e-6, rtol=1e-6)

    print("KERNEL_OK")
</pallas_src>

<mosaic_0001>
module attributes {stable_mosaic.version = 11 : i64} {
  func.func @_sfg_fc_kernel(%arg0: i32, %arg1: memref<1xi32, #tpu.memory_space<smem>>, %arg2: memref<1x1x256xf32, #tpu.memory_space<vmem>>, %arg3: memref<1x256xf32, #tpu.memory_space<vmem>>, %arg4: memref<1x256xf32, #tpu.memory_space<vmem>>) attributes {dimension_semantics = [#tpu.dimension_semantics<parallel>], iteration_bounds = array<i64: 1>, scalar_prefetch = 1 : i64, scratch_operands = 0 : i64, tpu.core_type = #tpu.core_type<tc>, window_params = [{transform_indices = @transform_0, window_bounds = array<i64: 1, 1, 256>}, {transform_indices = @transform_1, window_bounds = array<i64: 1, 256>}, {transform_indices = @transform_2, window_bounds = array<i64: 1, 256>}]} {
    %c0 = arith.constant 0 : index
    %c0_0 = arith.constant 0 : index
    %0 = vector.load %arg3[%c0, %c0_0] : memref<1x256xf32, #tpu.memory_space<vmem>>, vector<1x256xf32>
    %c0_1 = arith.constant 0 : index
    %c0_2 = arith.constant 0 : index
    %c0_3 = arith.constant 0 : index
    %1 = vector.load %arg2[%c0_1, %c0_2, %c0_3] : memref<1x1x256xf32, #tpu.memory_space<vmem>>, vector<1x1x256xf32>
    %2 = vector.shape_cast %1 : vector<1x1x256xf32> to vector<1x256xf32>
    %3 = arith.mulf %0, %2 : vector<1x256xf32>
    %c0_4 = arith.constant 0 : index
    %c0_5 = arith.constant 0 : index
    %4 = vector.load %arg4[%c0_4, %c0_5] : memref<1x256xf32, #tpu.memory_space<vmem>>, vector<1x256xf32>
    tpu.vector_store %arg4[%c0_4, %c0_5], %3 {strides = array<i32>} : memref<1x256xf32, #tpu.memory_space<vmem>>, vector<1x256xf32>,
    return
  }
  func.func @transform_0(%arg0: i32, %arg1: memref<1xi32, #tpu.memory_space<smem>>) -> (i32, i32, i32) {
    %c0 = arith.constant 0 : index
    %0 = memref.load %arg1[%c0] : memref<1xi32, #tpu.memory_space<smem>>
    %c0_i32 = arith.constant 0 : i32
    %c0_i32_0 = arith.constant 0 : i32
    %c0_i32_1 = arith.constant 0 : i32
    return %0, %c0_i32, %c0_i32_0 : i32, i32, i32
  }
  func.func @transform_1(%arg0: i32, %arg1: memref<1xi32, #tpu.memory_space<smem>>) -> (i32, i32) {
    %c0_i32 = arith.constant 0 : i32
    %c0_i32_0 = arith.constant 0 : i32
    return %arg0, %c0_i32 : i32, i32
  }
  func.func @transform_2(%arg0: i32, %arg1: memref<1xi32, #tpu.memory_space<smem>>) -> (i32, i32) {
    %c0_i32 = arith.constant 0 : i32
    %c0_i32_0 = arith.constant 0 : i32
    return %arg0, %c0_i32 : i32, i32
  }
}

</mosaic_0001>

<llo_original>
// kernel: tpu_custom_call.1
$region0: #{tpu_custom_call.1}
  #allocation0 [shape = 'u32[]', space=smem, size = 0x4, offset = 0x4, fixed_abs, tag = 'smem constant byte address 0x4 - core index']
  #allocation1 [shape = 'u32[144,128]{1,0:T(1,128)}', space=vmem, size = 0x12000, scoped, tag = 'internal scratch']
  #allocation2 [shape = 's32[1]{0}', space=sflag, size = 0x4, scoped, tag = 'scoped memory for tpu_custom_call.1']
  #allocation3 [shape = 's32[1]{0:T(128)S(6)}', space=smem, size = 0x200, scoped, tag = 'prefetched SMEM operand 0']
  %s0 = inlined_call_operand.<no memory space> [shape: s32[1], index: 0, kind: input, shape index: {}]
  %s1 = inlined_call_operand.vmem [shape: f32[3,1,256], index: 1, kind: input, shape index: {}]
  %s2 = inlined_call_operand.hbm [shape: f32[1,256], index: 2, kind: input, shape index: {}, may-alias: {2,3}]
  %s3 = inlined_call_operand.hbm [shape: f32[1,256], index: 3, kind: output, shape index: {}, may-alias: {2,3}]
  %s4 = sld [smem:[#allocation0]]
  $region22: #{tpu_custom_call.1} parent=0
    _
  %s6 = ssub.s32 1, %s4
  %s7 = scalar_select 0, %s6, %s4
  %8 = sst [smem:[#allocation3]] %s0
  $region1: #{tpu_custom_call.1} parent=0
    #allocation4 [shape = 'u8[1024]{0}', space=vmem, size = 0x400, scoped, tag = 'input window, operand 2, single buffered']
    #allocation5 [shape = 's32[1]{0}', space=sflag, size = 0x4, scoped, tag = 'scoped memory for tpu_custom_call.1']
    #allocation6 [shape = 's32[1]{0}', space=sflag, size = 0x4, scoped, tag = 'scoped memory for tpu_custom_call.1']
    #allocation7 [shape = 'u8[1024]{0}', space=vmem, size = 0x400, scoped, tag = 'output window, operand 0, single buffered']
    %9 = vsyncpa [#allocation5], 0
    %10 = vsyncpa [#allocation6], 0
    // Predicated region
    $region2: #{tpu_custom_call.1} parent=1 // pred_check
      _
    $region3: #{tpu_custom_call.1} parent=1 // pred_check_branch
      %12 = sbr.rel (0) target = $region5
    $region4: #{tpu_custom_call.1} parent=1 // pred_region
      %s13 = sld [smem:[#allocation3]]
      %p14 = scmp.lt.s32.totalorder %s13, 2
      %s15 = scalar_select %p14, %s13, 2
      %s16 = smul.addr %s15, 2
      %s17 = scalar_lea.vmem %s1, %s16
      %s18 = sld [smem:[#allocation3]]
    $region5: #{tpu_custom_call.1} parent=1 // pred_fallthru
      _
    // Predicated region
    $region6: #{tpu_custom_call.1} parent=1 // pred_check
      _
    $region7: #{tpu_custom_call.1} parent=1 // pred_check_branch
      %20 = sbr.rel (0) target = $region9
    $region8: #{tpu_custom_call.1} parent=1 // pred_region
      %s22 = ssub.s32 32, 32
      %23 = vsyncadd [#allocation5], %s22
      %s25 = sshll.u32 [#allocation4], 4
      %s26 = int_to_ptr.vmem [resolvable:$true] %s25
      %28 = dma.hbm_to_vmem [thread:$0]  %s2, 32, %s26, [#allocation5]
    $region9: #{tpu_custom_call.1} parent=1 // pred_fallthru
      _
    // Predicated region
    $region10: #{tpu_custom_call.1} parent=1 // pred_check
      _
    $region11: #{tpu_custom_call.1} parent=1 // pred_check_branch
      %30 = sbr.rel (0) target = $region13
    $region12: #{tpu_custom_call.1} parent=1 // pred_region
      %31 = dma.done [#allocation5], 32
    $region13: #{tpu_custom_call.1} parent=1 // pred_fallthru
      _
    %s32 = sld [smem:[#allocation3]]
    %p33 = scmp.lt.s32.totalorder %s32, 2
    %s34 = scalar_select %p33, %s32, 2
    %s35 = smul.addr %s34, 2
    %s36 = scalar_lea.vmem %s1, %s35
    %s37 = sld [smem:[#allocation3]]
    %p38 = scmp.lt.s32.totalorder %s37, 2
    %s39 = scalar_select %p38, %s37, 2
    %s40 = smul.addr %s39, 2
    %s41 = scalar_lea.vmem %s1, %s40
    %s42 = sld [smem:[#allocation3]]
    %v43 = vld [vmem:[#allocation4] sm:$0x3]
    %v44 = vld [vmem:[%s41] sm:$0x3]
    %v45 = vmul.f32 %v43, %v44
    %v46 = vlaneseq
    %vm47 = vcmp.ge.s32.totalorder %v46, 0
    %vm48 = vcmp.lt.s32.totalorder %v46, 256
    %vm49 = vmand %vm47, %vm48
    %50 = vst.msk [vmem:[#allocation7] sm:$0x3] %vm49, %v45
    // Predicated region
    $region14: #{tpu_custom_call.1} parent=1 // pred_check
      _
    $region15: #{tpu_custom_call.1} parent=1 // pred_check_branch
      %52 = sbr.rel (0) target = $region17
    $region16: #{tpu_custom_call.1} parent=1 // pred_region
      %s54 = ssub.s32 32, 32
      %55 = vsyncadd [#allocation6], %s54
      %s57 = sshll.u32 [#allocation7], 4
      %s58 = int_to_ptr.vmem [resolvable:$true] %s57
      %60 = dma.vmem_to_hbm [thread:$0]  %s58, 32, %s3, [#allocation6]
    $region17: #{tpu_custom_call.1} parent=1 // pred_fallthru
      _
    // Predicated region
    $region18: #{tpu_custom_call.1} parent=1 // pred_check
      _
    $region19: #{tpu_custom_call.1} parent=1 // pred_check_branch
      %62 = sbr.rel (0) target = $region21
    $region20: #{tpu_custom_call.1} parent=1 // pred_region
      %63 = dma.done [#allocation6], 32
    $region21: #{tpu_custom_call.1} parent=1 // pred_fallthru
      _
    %64 = vsyncpa [#allocation5], 1
    %65 = vsyncpa [#allocation6], 1

</llo_original>
